<compile_context>
chip_gen: v6e
topology: v6e:2x2x1
jax: 0.10.0
libtpu: 0.0.40
codegen_flags: <defaults>
</compile_context>

<pallas_src>
from functools import partial

import jax
import jax.numpy as jnp
from jax.experimental import pallas as pl
from jax.experimental.pallas import tpu as pltpu

IN_F = 28 * 28          # 784
H1, H2, OUT = 80, 16, 10
PAD = 128               # lane-dense padded output width


def _round_up(n, m):
    return ((n + m - 1) // m) * m


def _cdiv(a, b):
    return (a + b - 1) // b


def _pad2d(a, rows, cols):
    return jnp.pad(a, ((0, rows - a.shape[0]), (0, cols - a.shape[1])))


def mlp_kernel(x_ref, wf_ref, bf_ref, o_ref):
    # x_ref:  (TB, 784)  bf16   (batch tile, pipelined)
    # wf_ref: (784, 128) bf16   (folded W1@W2@W3, zero-padded, resident)
    # bf_ref: (1, 128)   f32    (folded bias, zero-padded, resident)
    # o_ref:  (TB, 128)  bf16   (cols 10..127 are zero; sliced in wrapper)
    acc = jnp.dot(x_ref[...], wf_ref[...], preferred_element_type=jnp.float32)
    o_ref[...] = (acc + bf_ref[...]).astype(o_ref.dtype)


def prepare_params(params):
    """One-time prep: fold the three affine layers in f32, pad to lane-dense
    widths, cast the matmul operand to bf16. Call once, reuse per inference."""
    w1, b1, w2, b2, w3, b3 = params
    wf = w1 @ w2 @ w3                                 # (784, 10) f32
    bf = b1 @ w2 @ w3 + b2 @ w3 + b3                  # (1, 10)   f32
    wf_p = _pad2d(wf, IN_F, PAD).astype(jnp.bfloat16)  # (784, 128) bf16
    bf_p = _pad2d(bf, 1, PAD).astype(jnp.float32)      # (1, 128)   f32
    return wf_p, bf_p


@partial(jax.jit, static_argnames=("tb_max",))
def mnist_mlp_forward(x_nchw, wf_p, bf_p, *, tb_max=1024):
    """x_nchw: (B, 1, 28, 28) -> logits (B, 10) float32."""
    B = x_nchw.shape[0]
    # nn.Flatten(): flatten all dims except batch (row-major, same as torch).
    x2d = x_nchw.reshape(B, -1).astype(jnp.bfloat16)

    # Batch tile: multiple of 8 (sublane), capped at tb_max, and sized so the
    # grid has >= 2 steps (so v7x's 2 TensorCores both get work).
    TB = min(tb_max, _round_up(max(_cdiv(B, 2), 8), 8))
    B_pad = _round_up(B, TB)
    if B_pad // TB < 2:
        B_pad = 2 * TB
    if B_pad != B:
        x2d = jnp.pad(x2d, ((0, B_pad - B), (0, 0)))

    grid = (B_pad // TB,)

    out_pad = pl.pallas_call(
        mlp_kernel,
        out_shape=jax.ShapeDtypeStruct((B_pad, PAD), jnp.bfloat16),
        grid=grid,
        in_specs=[
            pl.BlockSpec((TB, IN_F), lambda i: (i, 0)),   # x tile (pipelined)
            pl.BlockSpec((IN_F, PAD), lambda i: (0, 0)),  # folded W (resident)
            pl.BlockSpec((1, PAD), lambda i: (0, 0)),     # folded b (resident)
        ],
        out_specs=pl.BlockSpec((TB, PAD), lambda i: (i, 0)),
        compiler_params=pltpu.CompilerParams(
            dimension_semantics=("parallel",),            # 2-TC sharding on v7x
        ),
    )(x2d, wf_p, bf_p)

    return out_pad[:B, :OUT].astype(jnp.float32)


def init_params(key):
    """Deterministic init mimicking torch.nn.Linear default:
    W, b ~ U(-1/sqrt(fan_in), 1/sqrt(fan_in)). Weights stored (in, out)."""
    dims = [(IN_F, H1), (H1, H2), (H2, OUT)]
    params = []
    for (fan_in, fan_out) in dims:
        key, kw, kb = jax.random.split(key, 3)
        bound = 1.0 / jnp.sqrt(jnp.float32(fan_in))
        w = jax.random.uniform(kw, (fan_in, fan_out), jnp.float32, -bound, bound)
        b = jax.random.uniform(kb, (1, fan_out), jnp.float32, -bound, bound)
        params += [w, b]
    return tuple(params)


if __name__ == "__main__":
    key = jax.random.PRNGKey(0)
    k_x, k_p = jax.random.split(key)

    B = 8
    x = jax.random.normal(k_x, (B, 1, 28, 28), dtype=jnp.float32)
    params = init_params(k_p)

    # One-time weight prep (fold + pad + bf16 cast), then the jitted forward.
    wf_p, bf_p = prepare_params(params)
    logits = mnist_mlp_forward(x, wf_p, bf_p)
    jax.block_until_ready(logits)

    # Pure-JAX f32 reference of the original (unfolded) chain.
    w1, b1, w2, b2, w3, b3 = params
    x2d = x.reshape(B, -1)
    ref = ((x2d @ w1 + b1) @ w2 + b2) @ w3 + b3
    assert logits.shape == (B, OUT)
    # bf16 matmul operands (f32 accumulation) -> ~1e-2-level relative error.
    assert jnp.allclose(logits, ref, atol=3e-2, rtol=3e-2)

    print("KERNEL_OK")
</pallas_src>

<mosaic_0001>
module attributes {stable_mosaic.version = 11 : i64} {
  func.func @mlp_kernel(%arg0: i32, %arg1: memref<8x784xbf16, #tpu.memory_space<vmem>>, %arg2: memref<784x128xbf16, #tpu.memory_space<vmem>>, %arg3: memref<1x128xf32, #tpu.memory_space<vmem>>, %arg4: memref<8x128xbf16, #tpu.memory_space<vmem>>) attributes {dimension_semantics = [#tpu.dimension_semantics<parallel>], iteration_bounds = array<i64: 2>, scalar_prefetch = 0 : i64, scratch_operands = 0 : i64, tpu.core_type = #tpu.core_type<tc>, window_params = [{transform_indices = @transform_0, window_bounds = array<i64: 8, 784>}, {pipeline_mode = #tpu.pipeline_mode<synchronous>, transform_indices = @transform_1, window_bounds = array<i64: 784, 128>}, {pipeline_mode = #tpu.pipeline_mode<synchronous>, transform_indices = @transform_2, window_bounds = array<i64: 1, 128>}, {transform_indices = @transform_3, window_bounds = array<i64: 8, 128>}]} {
    %c0 = arith.constant 0 : index
    %c0_0 = arith.constant 0 : index
    %0 = vector.load %arg1[%c0, %c0_0] : memref<8x784xbf16, #tpu.memory_space<vmem>>, vector<8x784xbf16>
    %c0_1 = arith.constant 0 : index
    %c0_2 = arith.constant 0 : index
    %1 = vector.load %arg2[%c0_1, %c0_2] : memref<784x128xbf16, #tpu.memory_space<vmem>>, vector<784x128xbf16>
    %cst = arith.constant dense<0.000000e+00> : vector<8x128xf32>
    %2 = tpu.matmul %0, %1, %cst {dimension_numbers = #tpu.dot_dimension_numbers<[1], [0], [0], [1], [0, 0, 1, 1], [], []>} : vector<8x784xbf16>, vector<784x128xbf16>, vector<8x128xf32> -> vector<8x128xf32>
    %c0_3 = arith.constant 0 : index
    %c0_4 = arith.constant 0 : index
    %3 = vector.load %arg3[%c0_3, %c0_4] : memref<1x128xf32, #tpu.memory_space<vmem>>, vector<1x128xf32>
    %4 = vector.broadcast %3 : vector<1x128xf32> to vector<8x128xf32>
    %5 = arith.addf %2, %4 : vector<8x128xf32>
    %6 = arith.truncf %5 : vector<8x128xf32> to vector<8x128xbf16>
    %c0_5 = arith.constant 0 : index
    %c0_6 = arith.constant 0 : index
    %7 = vector.load %arg4[%c0_5, %c0_6] : memref<8x128xbf16, #tpu.memory_space<vmem>>, vector<8x128xbf16>
    tpu.vector_store %arg4[%c0_5, %c0_6], %6 {strides = array<i32>} : memref<8x128xbf16, #tpu.memory_space<vmem>>, vector<8x128xbf16>,
    return
  }
  func.func @transform_0(%arg0: i32) -> (i32, i32) {
    %c0_i32 = arith.constant 0 : i32
    %c0_i32_0 = arith.constant 0 : i32
    return %arg0, %c0_i32 : i32, i32
  }
  func.func @transform_1(%arg0: i32) -> (i32, i32) {
    %c0_i32 = arith.constant 0 : i32
    %c0_i32_0 = arith.constant 0 : i32
    %c0_i32_1 = arith.constant 0 : i32
    return %c0_i32, %c0_i32_0 : i32, i32
  }
  func.func @transform_2(%arg0: i32) -> (i32, i32) {
    %c0_i32 = arith.constant 0 : i32
    %c0_i32_0 = arith.constant 0 : i32
    %c0_i32_1 = arith.constant 0 : i32
    return %c0_i32, %c0_i32_0 : i32, i32
  }
  func.func @transform_3(%arg0: i32) -> (i32, i32) {
    %c0_i32 = arith.constant 0 : i32
    %c0_i32_0 = arith.constant 0 : i32
    return %arg0, %c0_i32 : i32, i32
  }
}

</mosaic_0001>

<llo_original>
// kernel: mnist_mlp_forward.1
$region0: #{mnist_mlp_forward.1}
  #allocation0 [shape = 'u32[]', space=smem, size = 0x4, offset = 0x4, fixed_abs, tag = 'smem constant byte address 0x4 - core index']
  #allocation1 [shape = 'u32[144,128]{1,0:T(1,128)}', space=vmem, size = 0x12000, scoped, tag = 'internal scratch']
  %s0 = inlined_call_operand.vmem [shape: bf16[16,784], index: 0, kind: input, shape index: {}]
  %s1 = inlined_call_operand.vmem [shape: bf16[784,128], index: 1, kind: input, shape index: {}]
  %s2 = inlined_call_operand.vmem [shape: f32[1,128], index: 2, kind: input, shape index: {}]
  %s3 = inlined_call_operand.vmem [shape: bf16[16,128], index: 3, kind: output, shape index: {}]
  %s4 = sld [smem:[#allocation0]]
  $region45: #{mnist_mlp_forward.1} parent=0
    _
  %s6 = ssub.s32 1, %s4
  %s7 = scalar_select 0, %s6, %s4
  loop: start=0, step=1, limit=4
  $region2: #{mnist_mlp_forward.1} parent=0 // loop_pre_header
    _
  $region3: #{mnist_mlp_forward.1} parent=0 // loop_header
    %s9 = sphi 0, %s13
    %p10 = scmp.ge.s32.totalorder %s9, 4
    %s19 = sphi 0, %s21
    %s22 = sphi 0, %s19
    %s23 = sphi 0, %s22
    %s39 = sphi 0, %s23
    %s43 = sphi 0, %s43
    %s45 = sphi 0, %s43
    %s46 = sphi 0, %s45
    %s60 = sphi 0, %s46
    %s64 = sphi 0, %s64
    %s66 = sphi 0, %s64
    %s67 = sphi 0, %s66
    %s81 = sphi 0, %s67
    %s87 = sphi 0, %s89
    %s90 = sphi 0, %s87
    %s91 = sphi 0, %s90
    %s107 = sphi 0, %s91
  $region4: #{mnist_mlp_forward.1} parent=0 // loop_header_branch
    %12 = sbr.rel (%p10) target = $region8
  $region5: #{mnist_mlp_forward.1} parent=0 // loop_body
    %s14 = ssub.s32 %s9, 1
    %s15 = ssub.s32 %s9, 2
    %s16 = sadd.s32 %s9, 1
    %s17 = ssub.s32 %s9, %s16
    %p18 = scmp.eq.s32.totalorder %s17, 0
    %s20 = sadd.s32 %s19, 1
    %s21 = scalar_select %p18, %s19, %s20
    %p24 = pneg %p18
    %p25 = scmp.eq.s32.totalorder %s9, 1
    %p26 = por %p24, %p25
    %p27 = scmp.ne.s32.totalorder %s19, %s22
    %p28 = scmp.eq.s32.totalorder %s9, 0
    %p29 = por %p27, %p28
    %p30 = scmp.ne.s32.totalorder %s19, %s22
    %p31 = scmp.eq.s32.totalorder %s14, 1
    %p32 = por %p30, %p31
    %p33 = scmp.ne.s32.totalorder %s22, %s23
    %p34 = scmp.eq.s32.totalorder %s14, 0
    %p35 = por %p33, %p34
    %p36 = scmp.ne.s32.totalorder %s22, %s23
    %p37 = scmp.eq.s32.totalorder %s15, 1
    %p38 = por %p36, %p37
    %p40 = scmp.ne.s32.totalorder %s23, %s39
    %p41 = scmp.eq.s32.totalorder %s15, 0
    %p42 = por %p40, %p41
    %s44 = sadd.s32 %s43, 1
    %p47 = scmp.eq.s32.totalorder %s9, 1
    %p48 = scmp.ne.s32.totalorder %s43, %s45
    %p49 = scmp.eq.s32.totalorder %s9, 0
    %p50 = por %p48, %p49
    %p51 = scmp.ne.s32.totalorder %s43, %s45
    %p52 = scmp.eq.s32.totalorder %s14, 1
    %p53 = por %p51, %p52
    %p54 = scmp.ne.s32.totalorder %s45, %s46
    %p55 = scmp.eq.s32.totalorder %s14, 0
    %p56 = por %p54, %p55
    %p57 = scmp.ne.s32.totalorder %s45, %s46
    %p58 = scmp.eq.s32.totalorder %s15, 1
    %p59 = por %p57, %p58
    %p61 = scmp.ne.s32.totalorder %s46, %s60
    %p62 = scmp.eq.s32.totalorder %s15, 0
    %p63 = por %p61, %p62
    %s65 = sadd.s32 %s64, 1
    %p68 = scmp.eq.s32.totalorder %s9, 1
    %p69 = scmp.ne.s32.totalorder %s64, %s66
    %p70 = scmp.eq.s32.totalorder %s9, 0
    %p71 = por %p69, %p70
    %p72 = scmp.ne.s32.totalorder %s64, %s66
    %p73 = scmp.eq.s32.totalorder %s14, 1
    %p74 = por %p72, %p73
    %p75 = scmp.ne.s32.totalorder %s66, %s67
    %p76 = scmp.eq.s32.totalorder %s14, 0
    %p77 = por %p75, %p76
    %p78 = scmp.ne.s32.totalorder %s66, %s67
    %p79 = scmp.eq.s32.totalorder %s15, 1
    %p80 = por %p78, %p79
    %p82 = scmp.ne.s32.totalorder %s67, %s81
    %p83 = scmp.eq.s32.totalorder %s15, 0
    %p84 = por %p82, %p83
    %s85 = ssub.s32 %s9, %s16
    %p86 = scmp.eq.s32.totalorder %s85, 0
    %s88 = sadd.s32 %s87, 1
    %s89 = scalar_select %p86, %s87, %s88
    %p92 = pneg %p86
    %p93 = scmp.eq.s32.totalorder %s9, 1
    %p94 = por %p92, %p93
    %p95 = scmp.ne.s32.totalorder %s87, %s90
    %p96 = scmp.eq.s32.totalorder %s9, 0
    %p97 = por %p95, %p96
    %p98 = scmp.ne.s32.totalorder %s87, %s90
    %p99 = scmp.eq.s32.totalorder %s14, 1
    %p100 = por %p98, %p99
    %p101 = scmp.ne.s32.totalorder %s90, %s91
    %p102 = scmp.eq.s32.totalorder %s14, 0
    %p103 = por %p101, %p102
    %p104 = scmp.ne.s32.totalorder %s90, %s91
    %p105 = scmp.eq.s32.totalorder %s15, 1
    %p106 = por %p104, %p105
    %p108 = scmp.ne.s32.totalorder %s91, %s107
    %p109 = scmp.eq.s32.totalorder %s15, 0
    %p110 = por %p108, %p109
    %p111 = scmp.le.s32.totalorder 1, %s9
    %p112 = scmp.lt.s32.totalorder %s9, 3
    %p113 = pnand %p111, %p112
    %p114 = pneg %p113
    // Predicated region
    $region9: #{mnist_mlp_forward.1} parent=5 // pred_check
      _
    $region10: #{mnist_mlp_forward.1} parent=5 // pred_check_branch
      %116 = sbr.rel (%p113) target = $region12
    $region11: #{mnist_mlp_forward.1} parent=5 // pred_region
      %s117 = ssub.s32 %s9, 1
      // Predicated region
      $region13: #{mnist_mlp_forward.1} parent=11 // pred_check
        %p118 = pneg %p56
      $region14: #{mnist_mlp_forward.1} parent=11 // pred_check_branch
        %120 = sbr.rel (%p118) target = $region16
      $region15: #{mnist_mlp_forward.1} parent=11 // pred_region
        _
      $region16: #{mnist_mlp_forward.1} parent=11 // pred_fallthru
        _
      // Predicated region
      $region17: #{mnist_mlp_forward.1} parent=11 // pred_check
        %p121 = pneg %p77
      $region18: #{mnist_mlp_forward.1} parent=11 // pred_check_branch
        %123 = sbr.rel (%p121) target = $region20
      $region19: #{mnist_mlp_forward.1} parent=11 // pred_region
        _
      $region20: #{mnist_mlp_forward.1} parent=11 // pred_fallthru
        _
    $region12: #{mnist_mlp_forward.1} parent=5 // pred_fallthru
      _
    %p124 = scmp.lt.s32.totalorder %s9, 2
    // Predicated region
    $region21: #{mnist_mlp_forward.1} parent=5 // pred_check
      %p125 = pneg %p124
    $region22: #{mnist_mlp_forward.1} parent=5 // pred_check_branch
      %127 = sbr.rel (%p125) target = $region24
    $region23: #{mnist_mlp_forward.1} parent=5 // pred_region
      // Predicated region
      $region25: #{mnist_mlp_forward.1} parent=23 // pred_check
        %p128 = pneg %p29
      $region26: #{mnist_mlp_forward.1} parent=23 // pred_check_branch
        %130 = sbr.rel (%p128) target = $region28
      $region27: #{mnist_mlp_forward.1} parent=23 // pred_region
        %p131 = scmp.lt.s32.totalorder %s9, 1
        %s132 = scalar_select %p131, %s9, 1
        %s133 = smul.addr %s132, 7
        %s134 = smul.addr %s133, 4
        %s135 = scalar_lea.vmem %s0, %s134
      $region28: #{mnist_mlp_forward.1} parent=23 // pred_fallthru
        _
    $region24: #{mnist_mlp_forward.1} parent=5 // pred_fallthru
      _
    %p136 = scmp.le.s32.totalorder 1, %s9
    %p137 = scmp.lt.s32.totalorder %s9, 3
    %p138 = pnand %p136, %p137
    %p139 = pneg %p138
    // Predicated region
    $region29: #{mnist_mlp_forward.1} parent=5 // pred_check
      _
    $region30: #{mnist_mlp_forward.1} parent=5 // pred_check_branch
      %141 = sbr.rel (%p138) target = $region32
    $region31: #{mnist_mlp_forward.1} parent=5 // pred_region
      %s142 = ssub.s32 %s9, 1
      %p143 = scmp.lt.s32.totalorder %s14, 1
      %s144 = scalar_select %p143, %s14, 1
      %s145 = smul.addr %s144, 7
      %s146 = smul.addr %s145, 4
      %s147 = scalar_lea.vmem %s0, %s146
      %p148 = pneg %p35
      %p149 = pneg %p32
      %p150 = pneg %p56
      %p151 = pneg %p53
      %p152 = pneg %p77
      %p153 = pneg %p74
      %p154 = pneg %p103
      %p155 = pneg %p100
      %p156 = scmp.lt.s32.totalorder %s14, 1
      %s157 = scalar_select %p156, %s14, 1
      %s158 = smul.addr %s157, 4
      %s159 = scalar_lea.vmem %s3, %s158
      %p160 = scmp.lt.s32.totalorder %s14, 1
      %s161 = scalar_select %p160, %s14, 1
      %s162 = smul.addr %s161, 7
      %s163 = smul.addr %s162, 4
      %s164 = scalar_lea.vmem %s0, %s163
      %p165 = scmp.lt.s32.totalorder %s14, 1
      %s166 = scalar_select %p165, %s14, 1
      %s167 = smul.addr %s166, 4
      %s168 = scalar_lea.vmem %s3, %s167
      %v170 = vld [vmem:[%s164] sm:$0xff]
      %v171 = vld [vmem:[%s164 + $0x8] sm:$0xff]
      %v172 = vld [vmem:[%s164 + $0x10] sm:$0xff]
      %v173 = vld [vmem:[%s164 + $0x18] sm:$0xf]
      %v174 = vld [vmem:[%s1] sm:$0xf]
      %v175 = vld [vmem:[%s1 + $0x4] sm:$0xf]
      %v176 = vld [vmem:[%s1 + $0x8] sm:$0xf]
      %v177 = vld [vmem:[%s1 + $0xc] sm:$0xf]
      %v178 = vld [vmem:[%s1 + $0x10] sm:$0xf]
      %v179 = vld [vmem:[%s1 + $0x14] sm:$0xf]
      %v180 = vld [vmem:[%s1 + $0x18] sm:$0xf]
      %v181 = vld [vmem:[%s1 + $0x1c] sm:$0xf]
      %v182 = vld [vmem:[%s1 + $0x20] sm:$0xf]
      %v183 = vld [vmem:[%s1 + $0x24] sm:$0xf]
      %v184 = vld [vmem:[%s1 + $0x28] sm:$0xf]
      %v185 = vld [vmem:[%s1 + $0x2c] sm:$0xf]
      %v186 = vld [vmem:[%s1 + $0x30] sm:$0xf]
      %v187 = vld [vmem:[%s1 + $0x34] sm:$0xf]
      %v188 = vld [vmem:[%s1 + $0x38] sm:$0xf]
      %v189 = vld [vmem:[%s1 + $0x3c] sm:$0xf]
      %v190 = vld [vmem:[%s1 + $0x40] sm:$0xf]
      %v191 = vld [vmem:[%s1 + $0x44] sm:$0xf]
      %v192 = vld [vmem:[%s1 + $0x48] sm:$0xf]
      %v193 = vld [vmem:[%s1 + $0x4c] sm:$0xf]
      %v194 = vld [vmem:[%s1 + $0x50] sm:$0xf]
      %v195 = vld [vmem:[%s1 + $0x54] sm:$0xf]
      %v196 = vld [vmem:[%s1 + $0x58] sm:$0xf]
      %v197 = vld [vmem:[%s1 + $0x5c] sm:$0xf]
      %v198 = vld [vmem:[%s1 + $0x60] sm:$0xf]
      %v199 = vld [vmem:[%s1 + $0x64] sm:$0xf]
      %v200 = vld [vmem:[%s1 + $0x68] sm:$0xf]
      %v201 = vld [vmem:[%s1 + $0x6c] sm:$0xf]
      %v202 = vld [vmem:[%s1 + $0x70] sm:$0xf]
      %v203 = vld [vmem:[%s1 + $0x74] sm:$0xf]
      %v204 = vld [vmem:[%s1 + $0x78] sm:$0xf]
      %v205 = vld [vmem:[%s1 + $0x7c] sm:$0xf]
      %v206 = vld [vmem:[%s1 + $0x80] sm:$0xf]
      %v207 = vld [vmem:[%s1 + $0x84] sm:$0xf]
      %v208 = vld [vmem:[%s1 + $0x88] sm:$0xf]
      %v209 = vld [vmem:[%s1 + $0x8c] sm:$0xf]
      %v210 = vld [vmem:[%s1 + $0x90] sm:$0xf]
      %v211 = vld [vmem:[%s1 + $0x94] sm:$0xf]
      %v212 = vld [vmem:[%s1 + $0x98] sm:$0xf]
      %v213 = vld [vmem:[%s1 + $0x9c] sm:$0xf]
      %v214 = vld [vmem:[%s1 + $0xa0] sm:$0xf]
      %v215 = vld [vmem:[%s1 + $0xa4] sm:$0xf]
      %v216 = vld [vmem:[%s1 + $0xa8] sm:$0xf]
      %v217 = vld [vmem:[%s1 + $0xac] sm:$0xf]
      %v218 = vld [vmem:[%s1 + $0xb0] sm:$0xf]
      %v219 = vld [vmem:[%s1 + $0xb4] sm:$0xf]
      %v220 = vld [vmem:[%s1 + $0xb8] sm:$0xf]
      %v221 = vld [vmem:[%s1 + $0xbc] sm:$0xf]
      %v222 = vld [vmem:[%s1 + $0xc0] sm:$0xf]
      %v223 = vld [vmem:[%s1 + $0xc4] sm:$0xf]
      %v224 = vld [vmem:[%s1 + $0xc8] sm:$0xf]
      %v225 = vld [vmem:[%s1 + $0xcc] sm:$0xf]
      %v226 = vld [vmem:[%s1 + $0xd0] sm:$0xf]
      %v227 = vld [vmem:[%s1 + $0xd4] sm:$0xf]
      %v228 = vld [vmem:[%s1 + $0xd8] sm:$0xf]
      %v229 = vld [vmem:[%s1 + $0xdc] sm:$0xf]
      %v230 = vld [vmem:[%s1 + $0xe0] sm:$0xf]
      %v231 = vld [vmem:[%s1 + $0xe4] sm:$0xf]
      %v232 = vld [vmem:[%s1 + $0xe8] sm:$0xf]
      %v233 = vld [vmem:[%s1 + $0xec] sm:$0xf]
      %v234 = vld [vmem:[%s1 + $0xf0] sm:$0xf]
      %v235 = vld [vmem:[%s1 + $0xf4] sm:$0xf]
      %v236 = vld [vmem:[%s1 + $0xf8] sm:$0xf]
      %v237 = vld [vmem:[%s1 + $0xfc] sm:$0xf]
      %v238 = vld [vmem:[%s1 + $0x100] sm:$0xf]
      %v239 = vld [vmem:[%s1 + $0x104] sm:$0xf]
      %v240 = vld [vmem:[%s1 + $0x108] sm:$0xf]
      %v241 = vld [vmem:[%s1 + $0x10c] sm:$0xf]
      %v242 = vld [vmem:[%s1 + $0x110] sm:$0xf]
      %v243 = vld [vmem:[%s1 + $0x114] sm:$0xf]
      %v244 = vld [vmem:[%s1 + $0x118] sm:$0xf]
      %v245 = vld [vmem:[%s1 + $0x11c] sm:$0xf]
      %v246 = vld [vmem:[%s1 + $0x120] sm:$0xf]
      %v247 = vld [vmem:[%s1 + $0x124] sm:$0xf]
      %v248 = vld [vmem:[%s1 + $0x128] sm:$0xf]
      %v249 = vld [vmem:[%s1 + $0x12c] sm:$0xf]
      %v250 = vld [vmem:[%s1 + $0x130] sm:$0xf]
      %v251 = vld [vmem:[%s1 + $0x134] sm:$0xf]
      %v252 = vld [vmem:[%s1 + $0x138] sm:$0xf]
      %v253 = vld [vmem:[%s1 + $0x13c] sm:$0xf]
      %v254 = vld [vmem:[%s1 + $0x140] sm:$0xf]
      %v255 = vld [vmem:[%s1 + $0x144] sm:$0xf]
      %v256 = vld [vmem:[%s1 + $0x148] sm:$0xf]
      %v257 = vld [vmem:[%s1 + $0x14c] sm:$0xf]
      %v258 = vld [vmem:[%s1 + $0x150] sm:$0xf]
      %v259 = vld [vmem:[%s1 + $0x154] sm:$0xf]
      %v260 = vld [vmem:[%s1 + $0x158] sm:$0xf]
      %v261 = vld [vmem:[%s1 + $0x15c] sm:$0xf]
      %v262 = vld [vmem:[%s1 + $0x160] sm:$0xf]
      %v263 = vld [vmem:[%s1 + $0x164] sm:$0xf]
      %v264 = vld [vmem:[%s1 + $0x168] sm:$0xf]
      %v265 = vld [vmem:[%s1 + $0x16c] sm:$0xf]
      %v266 = vld [vmem:[%s1 + $0x170] sm:$0xf]
      %v267 = vld [vmem:[%s1 + $0x174] sm:$0xf]
      %v268 = vld [vmem:[%s1 + $0x178] sm:$0xf]
      %v269 = vld [vmem:[%s1 + $0x17c] sm:$0xf]
      %v270 = vld [vmem:[%s1 + $0x180] sm:$0xf]
      %v271 = vld [vmem:[%s1 + $0x184] sm:$0xf]
      %v272 = vld [vmem:[%s2] sm:$0x1]
      %v274 = vlaneseq
      %v275 = vshrl.u32 %v274, 7
      %v276 = vsub.s32 0, %v275
      %v277 = vrot.slane %v272, %v276
      %v283 = vunpack.c.l.b16 %v170
      %v284 = vunpack.c.h.b16 %v170
      %v285 = vunpack.c.l.b16 %v171
      %v286 = vunpack.c.h.b16 %v171
      %v287 = vunpack.c.l.b16 %v172
      %v288 = vunpack.c.h.b16 %v172
      %v289 = vunpack.c.l.b16 %v173
      %v290 = vpack.c.b16 %v283, %v283
      %v291 = vpack.c.b16 %v284, %v284
      %v292 = vpack.c.b16 %v285, %v285
      %v293 = vpack.c.b16 %v286, %v286
      %v294 = vpack.c.b16 %v287, %v287
      %v295 = vpack.c.b16 %v288, %v288
      %v296 = vpack.c.b16 %v289, %v289
      %v401 = vunpack.c.l.b16 %v174
      %v402 = vunpack.c.l.b16 %v175
      %v403 = vunpack.c.l.b16 %v176
      %v404 = vunpack.c.l.b16 %v177
      %v405 = vunpack.c.l.b16 %v178
      %v406 = vunpack.c.l.b16 %v179
      %v407 = vunpack.c.l.b16 %v180
      %v408 = vunpack.c.l.b16 %v181
      %v409 = vunpack.c.l.b16 %v182
      %v410 = vunpack.c.l.b16 %v183
      %v411 = vunpack.c.l.b16 %v184
      %v412 = vunpack.c.l.b16 %v185
      %v413 = vunpack.c.l.b16 %v186
      %v414 = vunpack.c.l.b16 %v187
      %v415 = vunpack.c.l.b16 %v188
      %v416 = vunpack.c.l.b16 %v189
      %v417 = vunpack.c.l.b16 %v190
      %v418 = vunpack.c.l.b16 %v191
      %v419 = vunpack.c.l.b16 %v192
      %v420 = vunpack.c.l.b16 %v193
      %v421 = vunpack.c.l.b16 %v194
      %v422 = vunpack.c.l.b16 %v195
      %v423 = vunpack.c.l.b16 %v196
      %v424 = vunpack.c.l.b16 %v197
      %v425 = vunpack.c.l.b16 %v198
      %v426 = vunpack.c.l.b16 %v199
      %v427 = vunpack.c.l.b16 %v200
      %v428 = vunpack.c.l.b16 %v201
      %v429 = vunpack.c.l.b16 %v202
      %v430 = vunpack.c.l.b16 %v203
      %v431 = vunpack.c.l.b16 %v204
      %v432 = vunpack.c.l.b16 %v205
      %v433 = vunpack.c.l.b16 %v206
      %v434 = vunpack.c.l.b16 %v207
      %v435 = vunpack.c.l.b16 %v208
      %v436 = vunpack.c.l.b16 %v209
      %v437 = vunpack.c.l.b16 %v210
      %v438 = vunpack.c.l.b16 %v211
      %v439 = vunpack.c.l.b16 %v212
      %v440 = vunpack.c.l.b16 %v213
      %v441 = vunpack.c.l.b16 %v214
      %v442 = vunpack.c.l.b16 %v215
      %v443 = vunpack.c.l.b16 %v216
      %v444 = vunpack.c.l.b16 %v217
      %v445 = vunpack.c.l.b16 %v218
      %v446 = vunpack.c.l.b16 %v219
      %v447 = vunpack.c.l.b16 %v220
      %v448 = vunpack.c.l.b16 %v221
      %v449 = vunpack.c.l.b16 %v222
      %v450 = vunpack.c.l.b16 %v223
      %v451 = vunpack.c.l.b16 %v224
      %v452 = vunpack.c.l.b16 %v225
      %v453 = vunpack.c.l.b16 %v226
      %v454 = vunpack.c.l.b16 %v227
      %v455 = vunpack.c.l.b16 %v228
      %v456 = vunpack.c.l.b16 %v229
      %v457 = vunpack.c.l.b16 %v230
      %v458 = vunpack.c.l.b16 %v231
      %v459 = vunpack.c.l.b16 %v232
      %v460 = vunpack.c.l.b16 %v233
      %v461 = vunpack.c.l.b16 %v234
      %v462 = vunpack.c.l.b16 %v235
      %v463 = vunpack.c.l.b16 %v236
      %v464 = vunpack.c.l.b16 %v237
      %v465 = vunpack.c.l.b16 %v238
      %v466 = vunpack.c.l.b16 %v239
      %v467 = vunpack.c.l.b16 %v240
      %v468 = vunpack.c.l.b16 %v241
      %v469 = vunpack.c.l.b16 %v242
      %v470 = vunpack.c.l.b16 %v243
      %v471 = vunpack.c.l.b16 %v244
      %v472 = vunpack.c.l.b16 %v245
      %v473 = vunpack.c.l.b16 %v246
      %v474 = vunpack.c.l.b16 %v247
      %v475 = vunpack.c.l.b16 %v248
      %v476 = vunpack.c.l.b16 %v249
      %v477 = vunpack.c.l.b16 %v250
      %v478 = vunpack.c.l.b16 %v251
      %v479 = vunpack.c.l.b16 %v252
      %v480 = vunpack.c.l.b16 %v253
      %v481 = vunpack.c.l.b16 %v254
      %v482 = vunpack.c.l.b16 %v255
      %v483 = vunpack.c.l.b16 %v256
      %v484 = vunpack.c.l.b16 %v257
      %v485 = vunpack.c.l.b16 %v258
      %v486 = vunpack.c.l.b16 %v259
      %v487 = vunpack.c.l.b16 %v260
      %v488 = vunpack.c.l.b16 %v261
      %v489 = vunpack.c.l.b16 %v262
      %v490 = vunpack.c.l.b16 %v263
      %v491 = vunpack.c.l.b16 %v264
      %v492 = vunpack.c.l.b16 %v265
      %v493 = vunpack.c.l.b16 %v266
      %v494 = vunpack.c.l.b16 %v267
      %v495 = vunpack.c.l.b16 %v268
      %v496 = vunpack.c.l.b16 %v269
      %v497 = vunpack.c.l.b16 %v270
      %v498 = vunpack.c.l.b16 %v271
      %v499 = vpack.c.b16 %v402, %v401
      %v500 = vpack.c.b16 %v404, %v403
      %v501 = vpack.c.b16 %v406, %v405
      %v502 = vpack.c.b16 %v408, %v407
      %v503 = vpack.c.b16 %v410, %v409
      %v504 = vpack.c.b16 %v412, %v411
      %v505 = vpack.c.b16 %v414, %v413
      %v506 = vpack.c.b16 %v416, %v415
      %v507 = vpack.c.b16 %v418, %v417
      %v508 = vpack.c.b16 %v420, %v419
      %v509 = vpack.c.b16 %v422, %v421
      %v510 = vpack.c.b16 %v424, %v423
      %v511 = vpack.c.b16 %v426, %v425
      %v512 = vpack.c.b16 %v428, %v427
      %v513 = vpack.c.b16 %v430, %v429
      %v514 = vpack.c.b16 %v432, %v431
      %v515 = vpack.c.b16 %v434, %v433
      %v516 = vpack.c.b16 %v436, %v435
      %v517 = vpack.c.b16 %v438, %v437
      %v518 = vpack.c.b16 %v440, %v439
      %v519 = vpack.c.b16 %v442, %v441
      %v520 = vpack.c.b16 %v444, %v443
      %v521 = vpack.c.b16 %v446, %v445
      %v522 = vpack.c.b16 %v448, %v447
      %v523 = vpack.c.b16 %v450, %v449
      %v524 = vpack.c.b16 %v452, %v451
      %v525 = vpack.c.b16 %v454, %v453
      %v526 = vpack.c.b16 %v456, %v455
      %v527 = vpack.c.b16 %v458, %v457
      %v528 = vpack.c.b16 %v460, %v459
      %v529 = vpack.c.b16 %v462, %v461
      %v530 = vpack.c.b16 %v464, %v463
      %v531 = vpack.c.b16 %v466, %v465
      %v532 = vpack.c.b16 %v468, %v467
      %v533 = vpack.c.b16 %v470, %v469
      %v534 = vpack.c.b16 %v472, %v471
      %v535 = vpack.c.b16 %v474, %v473
      %v536 = vpack.c.b16 %v476, %v475
      %v537 = vpack.c.b16 %v478, %v477
      %v538 = vpack.c.b16 %v480, %v479
      %v539 = vpack.c.b16 %v482, %v481
      %v540 = vpack.c.b16 %v484, %v483
      %v541 = vpack.c.b16 %v486, %v485
      %v542 = vpack.c.b16 %v488, %v487
      %v543 = vpack.c.b16 %v490, %v489
      %v544 = vpack.c.b16 %v492, %v491
      %v545 = vpack.c.b16 %v494, %v493
      %v546 = vpack.c.b16 %v496, %v495
      %v547 = vpack.c.b16 %v498, %v497
      %vm597 = vcmask 130048
      %v599 = vsel %vm597, %v296, 0
      %601 = vmatprep.subr.bf16.mxu0 0
      %602 = vmatpush1.bf16.msra.mxu0 %v506
      %603 = vmatprep.subr.bf16.mxu0 0
      %604 = vmatpush1.bf16.msra.mxu0 %v505
      %605 = vmatprep.subr.bf16.mxu0 0
      %606 = vmatpush1.bf16.msra.mxu0 %v504
      %607 = vmatprep.subr.bf16.mxu0 0
      %608 = vmatpush1.bf16.msra.mxu0 %v503
      %609 = vmatprep.subr.bf16.mxu0 0
      %610 = vmatpush1.bf16.msra.mxu0 %v502
      %611 = vmatprep.subr.bf16.mxu0 0
      %612 = vmatpush1.bf16.msra.mxu0 %v501
      %613 = vmatprep.subr.bf16.mxu0 0
      %614 = vmatpush1.bf16.msra.mxu0 %v500
      %615 = vmatprep.subr.bf16.mxu0 0
      %616 = vmatpush1.bf16.msra.mxu0 %v499
      %617 = vmatprep.subr.bf16.mxu0 0
      %618 = vmatpush2.bf16.msra.mxu0 %v514
      %619 = vmatprep.subr.bf16.mxu0 0
      %620 = vmatpush2.bf16.msra.mxu0 %v513
      %621 = vmatprep.subr.bf16.mxu0 0
      %622 = vmatpush2.bf16.msra.mxu0 %v512
      %623 = vmatprep.subr.bf16.mxu0 0
      %624 = vmatpush2.bf16.msra.mxu0 %v511
      %625 = vmatprep.subr.bf16.mxu0 0
      %626 = vmatpush2.bf16.msra.mxu0 %v510
      %627 = vmatprep.subr.bf16.mxu0 0
      %628 = vmatpush2.bf16.msra.mxu0 %v509
      %629 = vmatprep.subr.bf16.mxu0 0
      %630 = vmatpush2.bf16.msra.mxu0 %v508
      %631 = vmatprep.subr.bf16.mxu0 0
      %632 = vmatpush2.bf16.msra.mxu0 %v507
      %633 = vmatprep.mubr.bf16.mxu0 %v291
      %634 = vmatmul.mubr.bf16.gmra.mxu0 %v290
      %v635 = vpop.f32.mrf.mxu0
      %v636 = vadd.f32 %v277, %v635
      %v637 = vpop.f32.mrf.mxu0
      %v638 = vpop.f32.mrf.mxu0
      %v639 = vpop.f32.mrf.mxu0
      %640 = vdwg.mxu0
      %641 = vmatprep.subr.bf16.mxu0 0
      %642 = vmatpush1.bf16.msra.mxu0 %v522
      %643 = vmatprep.subr.bf16.mxu0 0
      %644 = vmatpush1.bf16.msra.mxu0 %v521
      %645 = vmatprep.subr.bf16.mxu0 0
      %646 = vmatpush1.bf16.msra.mxu0 %v520
      %647 = vmatprep.subr.bf16.mxu0 0
      %648 = vmatpush1.bf16.msra.mxu0 %v519
      %649 = vmatprep.subr.bf16.mxu0 0
      %650 = vmatpush1.bf16.msra.mxu0 %v518
      %651 = vmatprep.subr.bf16.mxu0 0
      %652 = vmatpush1.bf16.msra.mxu0 %v517
      %653 = vmatprep.subr.bf16.mxu0 0
      %654 = vmatpush1.bf16.msra.mxu0 %v516
      %655 = vmatprep.subr.bf16.mxu0 0
      %656 = vmatpush1.bf16.msra.mxu0 %v515
      %657 = vmatprep.subr.bf16.mxu0 0
      %658 = vmatpush2.bf16.msra.mxu0 %v530
      %659 = vmatprep.subr.bf16.mxu0 0
      %660 = vmatpush2.bf16.msra.mxu0 %v529
      %661 = vmatprep.subr.bf16.mxu0 0
      %662 = vmatpush2.bf16.msra.mxu0 %v528
      %663 = vmatprep.subr.bf16.mxu0 0
      %664 = vmatpush2.bf16.msra.mxu0 %v527
      %665 = vmatprep.subr.bf16.mxu0 0
      %666 = vmatpush2.bf16.msra.mxu0 %v526
      %667 = vmatprep.subr.bf16.mxu0 0
      %668 = vmatpush2.bf16.msra.mxu0 %v525
      %669 = vmatprep.subr.bf16.mxu0 0
      %670 = vmatpush2.bf16.msra.mxu0 %v524
      %671 = vmatprep.subr.bf16.mxu0 0
      %672 = vmatpush2.bf16.msra.mxu0 %v523
      %673 = vmatprep.mubr.bf16.mxu0 %v293
      %674 = vmatmul.mubr.bf16.gmra.mxu0 %v292
      %v675 = vpop.f32.mrf.mxu0
      %v676 = vadd.f32 %v636, %v675
      %v677 = vpop.f32.mrf.mxu0
      %v678 = vpop.f32.mrf.mxu0
      %v679 = vpop.f32.mrf.mxu0
      %680 = vdwg.mxu0
      %681 = vmatprep.subr.bf16.mxu0 0
      %682 = vmatpush1.bf16.msra.mxu0 %v538
      %683 = vmatprep.subr.bf16.mxu0 0
      %684 = vmatpush1.bf16.msra.mxu0 %v537
      %685 = vmatprep.subr.bf16.mxu0 0
      %686 = vmatpush1.bf16.msra.mxu0 %v536
      %687 = vmatprep.subr.bf16.mxu0 0
      %688 = vmatpush1.bf16.msra.mxu0 %v535
      %689 = vmatprep.subr.bf16.mxu0 0
      %690 = vmatpush1.bf16.msra.mxu0 %v534
      %691 = vmatprep.subr.bf16.mxu0 0
      %692 = vmatpush1.bf16.msra.mxu0 %v533
      %693 = vmatprep.subr.bf16.mxu0 0
      %694 = vmatpush1.bf16.msra.mxu0 %v532
      %695 = vmatprep.subr.bf16.mxu0 0
      %696 = vmatpush1.bf16.msra.mxu0 %v531
      %697 = vmatprep.subr.bf16.mxu0 0
      %698 = vmatpush2.bf16.msra.mxu0 %v546
      %699 = vmatprep.subr.bf16.mxu0 0
      %700 = vmatpush2.bf16.msra.mxu0 %v545
      %701 = vmatprep.subr.bf16.mxu0 0
      %702 = vmatpush2.bf16.msra.mxu0 %v544
      %703 = vmatprep.subr.bf16.mxu0 0
      %704 = vmatpush2.bf16.msra.mxu0 %v543
      %705 = vmatprep.subr.bf16.mxu0 0
      %706 = vmatpush2.bf16.msra.mxu0 %v542
      %707 = vmatprep.subr.bf16.mxu0 0
      %708 = vmatpush2.bf16.msra.mxu0 %v541
      %709 = vmatprep.subr.bf16.mxu0 0
      %710 = vmatpush2.bf16.msra.mxu0 %v540
      %711 = vmatprep.subr.bf16.mxu0 0
      %712 = vmatpush2.bf16.msra.mxu0 %v539
      %713 = vmatprep.mubr.bf16.mxu0 %v295
      %714 = vmatmul.mubr.bf16.gmra.mxu0 %v294
      %v715 = vpop.f32.mrf.mxu0
      %v716 = vadd.f32 %v676, %v715
      %v717 = vpop.f32.mrf.mxu0
      %v718 = vpop.f32.mrf.mxu0
      %v719 = vpop.f32.mrf.mxu0
      %720 = vdwg.mxu0
      %721 = vmatprep.subr.bf16.mxu0 0
      %722 = vmatpush1.bf16.msra.mxu0 0
      %723 = vmatprep.subr.bf16.mxu0 0
      %724 = vmatpush1.bf16.msra.mxu0 0
      %725 = vmatprep.subr.bf16.mxu0 0
      %726 = vmatpush1.bf16.msra.mxu0 0
      %727 = vmatprep.subr.bf16.mxu0 0
      %728 = vmatpush1.bf16.msra.mxu0 0
      %729 = vmatprep.subr.bf16.mxu0 0
      %730 = vmatpush1.bf16.msra.mxu0 0
      %731 = vmatprep.subr.bf16.mxu0 0
      %732 = vmatpush1.bf16.msra.mxu0 0
      %733 = vmatprep.subr.bf16.mxu0 0
      %734 = vmatpush1.bf16.msra.mxu0 0
      %735 = vmatprep.subr.bf16.mxu0 0
      %736 = vmatpush1.bf16.msra.mxu0 %v547
      %737 = vmatprep.subr.bf16.mxu0 0
      %738 = vmatpush2.bf16.msra.mxu0 0
      %739 = vmatprep.subr.bf16.mxu0 0
      %740 = vmatpush2.bf16.msra.mxu0 0
      %741 = vmatprep.subr.bf16.mxu0 0
      %742 = vmatpush2.bf16.msra.mxu0 0
      %743 = vmatprep.subr.bf16.mxu0 0
      %744 = vmatpush2.bf16.msra.mxu0 0
      %745 = vmatprep.subr.bf16.mxu0 0
      %746 = vmatpush2.bf16.msra.mxu0 0
      %747 = vmatprep.subr.bf16.mxu0 0
      %748 = vmatpush2.bf16.msra.mxu0 0
      %749 = vmatprep.subr.bf16.mxu0 0
      %750 = vmatpush2.bf16.msra.mxu0 0
      %751 = vmatprep.subr.bf16.mxu0 0
      %752 = vmatpush2.bf16.msra.mxu0 0
      %753 = vmatprep.mubr.bf16.mxu0 0
      %754 = vmatmul.mubr.bf16.gmra.mxu0 %v599
      %v755 = vpop.f32.mrf.mxu0
      %v756 = vadd.f32 %v716, %v755
      %v757 = vpop.f32.mrf.mxu0
      %v758 = vpop.f32.mrf.mxu0
      %v759 = vpop.f32.mrf.mxu0
      %760 = vdwg.mxu0
      %v761 = vpack.c.bf16 %v756, %v756
      %762 = vst [vmem:[%s168] sm:$0xf] %v761
      %p763 = scmp.lt.s32.totalorder %s14, 1
      %s764 = scalar_select %p763, %s14, 1
      %s765 = smul.addr %s764, 4
      %s766 = scalar_lea.vmem %s3, %s765
      // Predicated region
      $region33: #{mnist_mlp_forward.1} parent=31 // pred_check
        %p767 = pneg %p100
      $region34: #{mnist_mlp_forward.1} parent=31 // pred_check_branch
        %769 = sbr.rel (%p767) target = $region36
      $region35: #{mnist_mlp_forward.1} parent=31 // pred_region
        _
      $region36: #{mnist_mlp_forward.1} parent=31 // pred_fallthru
        _
    $region32: #{mnist_mlp_forward.1} parent=5 // pred_fallthru
      _
    %p770 = scmp.le.s32.totalorder 2, %s9
    // Predicated region
    $region37: #{mnist_mlp_forward.1} parent=5 // pred_check
      %p771 = pneg %p770
    $region38: #{mnist_mlp_forward.1} parent=5 // pred_check_branch
      %773 = sbr.rel (%p771) target = $region40
    $region39: #{mnist_mlp_forward.1} parent=5 // pred_region
      %s774 = ssub.s32 %s9, 2
      // Predicated region
      $region41: #{mnist_mlp_forward.1} parent=39 // pred_check
        %p775 = pneg %p106
      $region42: #{mnist_mlp_forward.1} parent=39 // pred_check_branch
        %777 = sbr.rel (%p775) target = $region44
      $region43: #{mnist_mlp_forward.1} parent=39 // pred_region
        %p778 = scmp.lt.s32.totalorder %s15, 1
        %s779 = scalar_select %p778, %s15, 1
        %s780 = smul.addr %s779, 4
        %s781 = scalar_lea.vmem %s3, %s780
      $region44: #{mnist_mlp_forward.1} parent=39 // pred_fallthru
        _
    $region40: #{mnist_mlp_forward.1} parent=5 // pred_fallthru
      _
  $region6: #{mnist_mlp_forward.1} parent=0 // loop_footer
    %s13 = sadd.s32 1, %s9
  $region7: #{mnist_mlp_forward.1} parent=0 // loop_footer_branch
    %8 = sbr.rel target = $region3
  $region8: #{mnist_mlp_forward.1} parent=0 // loop_exit
    _

</llo_original>
